<compile_context>
chip_gen: v5e
topology: v5e:2x2
jax: 0.10.0
libtpu: 0.0.40
codegen_flags: <defaults>
</compile_context>

<pallas_src>
import functools

import jax
import jax.numpy as jnp
from jax.experimental import pallas as pl
from jax.experimental.pallas import tpu as pltpu


def _linear_kernel(x_ref, w_ref, b_ref, o_ref, acc_ref):
    # x_ref: (tm, tk), w_ref: (tk, tn), b_ref: (1, tn),
    # o_ref: (tm, tn), acc_ref: (tm, tn) f32 scratch.
    k = pl.program_id(2)

    @pl.when(k == 0)
    def _init():
        acc_ref[...] = jnp.zeros_like(acc_ref)

    acc_ref[...] += jnp.dot(
        x_ref[...], w_ref[...], preferred_element_type=jnp.float32
    )

    @pl.when(k == pl.num_programs(2) - 1)
    def _finalize():
        # Bias is added exactly once per (i, j) output tile.
        y = acc_ref[...] + b_ref[...].astype(jnp.float32)
        o_ref[...] = y.astype(o_ref.dtype)


def _round_up(v, m):
    return ((v + m - 1) // m) * m


def _pad2d(a, rows, cols):
    """Zero-pad a 2-D array to (rows, cols); no-op if already that shape."""
    r, c = a.shape
    if r == rows and c == cols:
        return a
    return jnp.pad(a, ((0, rows - r), (0, cols - c)))


@functools.partial(jax.jit, static_argnames=("tm", "tn", "tk"))
def my_linear(x, weight, bias, *, tm=256, tn=512, tk=512):
    """y = x @ weight.T + bias  (matches torch: x @ W.t() + b).

    x:      (batch, in_features)
    weight: (out_features, in_features)   [PyTorch convention]
    bias:   (out_features,)
    """
    batch, in_features = x.shape
    out_features, in_features_w = weight.shape
    assert in_features == in_features_w
    assert bias.shape == (out_features,)

    # Pre-transpose weight once (XLA-side, fused with the pad below) -> (K, N)
    # so the kernel is a plain row-major matmul with a lane-dense N output.
    w_t = weight.T

    # Clamp tile sizes to the (8, 128)-aligned problem size.
    tm = min(tm, _round_up(batch, 8))
    tn = min(tn, _round_up(out_features, 128))
    tk = min(tk, _round_up(in_features, 128))

    m_pad = _round_up(batch, tm)
    n_pad = _round_up(out_features, tn)
    k_pad = _round_up(in_features, tk)

    # Zero-pad only when required (padding is skipped for aligned shapes).
    # Padded K rows/cols contribute 0 to the contraction; padded M rows / N
    # cols are sliced off at the end.
    x_p = _pad2d(x, m_pad, k_pad)
    w_p = _pad2d(w_t, k_pad, n_pad)
    if out_features == n_pad:
        b_p = bias.reshape(1, n_pad)
    else:
        b_p = jnp.pad(bias, (0, n_pad - out_features)).reshape(1, n_pad)

    grid = (m_pad // tm, n_pad // tn, k_pad // tk)

    dtype_bytes = x.dtype.itemsize
    cost = pl.CostEstimate(
        flops=2 * m_pad * n_pad * k_pad,
        transcendentals=0,
        bytes_accessed=(
            m_pad * k_pad * dtype_bytes            # x stream
            + k_pad * n_pad * w_p.dtype.itemsize   # weight stream
            + m_pad * n_pad * dtype_bytes          # output
        ),
    )

    out_padded = pl.pallas_call(
        _linear_kernel,
        out_shape=jax.ShapeDtypeStruct((m_pad, n_pad), x.dtype),
        grid_spec=pltpu.PrefetchScalarGridSpec(
            num_scalar_prefetch=0,
            grid=grid,
            in_specs=[
                pl.BlockSpec((tm, tk), lambda i, j, k: (i, k)),   # x tile
                pl.BlockSpec((tk, tn), lambda i, j, k: (k, j)),   # W^T tile
                pl.BlockSpec((1, tn), lambda i, j, k: (0, j)),    # bias tile
            ],
            out_specs=pl.BlockSpec((tm, tn), lambda i, j, k: (i, j)),
            scratch_shapes=[pltpu.VMEM((tm, tn), jnp.float32)],
        ),
        compiler_params=pltpu.CompilerParams(
            dimension_semantics=("parallel", "parallel", "arbitrary"),
        ),
        cost_estimate=cost,
    )(x_p, w_p, b_p)

    if batch == m_pad and out_features == n_pad:
        return out_padded
    return out_padded[:batch, :out_features]


if __name__ == "__main__":
    # Module shapes: weight (out_features, in_features), bias (out_features,).
    # Script-level input is x = torch.randn(2, 4) -> batch=2, in_features=4.
    batch, in_features, out_features = 2, 4, 8

    key = jax.random.PRNGKey(0)
    kx, kw, kb = jax.random.split(key, 3)
    x = jax.random.normal(kx, (batch, in_features), dtype=jnp.float32)
    weight = jax.random.normal(kw, (out_features, in_features), dtype=jnp.float32)
    bias = jax.random.normal(kb, (out_features,), dtype=jnp.float32)

    y = my_linear(x, weight, bias)
    jax.block_until_ready(y)

    # Sanity check against plain-JAX reference.
    y_ref = x @ weight.T + bias
    assert y.shape == (batch, out_features)
    assert jnp.allclose(y, y_ref, atol=1e-5, rtol=1e-5)

    # Aligned multi-tile shape (no padding path, multi-k reduction).
    kx2, kw2, kb2 = jax.random.split(jax.random.PRNGKey(1), 3)
    xb, kf, nf = 384, 1024, 768
    x2 = jax.random.normal(kx2, (xb, kf), dtype=jnp.float32)
    w2 = jax.random.normal(kw2, (nf, kf), dtype=jnp.float32)
    b2 = jax.random.normal(kb2, (nf,), dtype=jnp.float32)
    y2 = my_linear(x2, w2, b2)
    jax.block_until_ready(y2)
    y2_ref = x2 @ w2.T + b2
    assert jnp.allclose(y2, y2_ref, atol=2e-3, rtol=2e-3)

    # Ragged shape (exercises padding + slicing + multi-k-tile path).
    kx3, kw3, kb3 = jax.random.split(jax.random.PRNGKey(2), 3)
    xb3, kf3, nf3 = 300, 1000, 700
    x3 = jax.random.normal(kx3, (xb3, kf3), dtype=jnp.float32)
    w3 = jax.random.normal(kw3, (nf3, kf3), dtype=jnp.float32)
    b3 = jax.random.normal(kb3, (nf3,), dtype=jnp.float32)
    y3 = my_linear(x3, w3, b3)
    jax.block_until_ready(y3)
    y3_ref = x3 @ w3.T + b3
    assert y3.shape == (xb3, nf3)
    assert jnp.allclose(y3, y3_ref, atol=2e-3, rtol=2e-3)

    print("KERNEL_OK")
</pallas_src>

<mosaic_0001>
module attributes {stable_mosaic.version = 11 : i64} {
  func.func @_linear_kernel(%arg0: i32, %arg1: i32, %arg2: i32, %arg3: memref<8x128xf32, #tpu.memory_space<vmem>>, %arg4: memref<128x128xf32, #tpu.memory_space<vmem>>, %arg5: memref<1x128xf32, #tpu.memory_space<vmem>>, %arg6: memref<8x128xf32, #tpu.memory_space<vmem>>, %arg7: memref<8x128xf32, #tpu.memory_space<vmem>>) attributes {dimension_semantics = [#tpu.dimension_semantics<parallel>, #tpu.dimension_semantics<parallel>, #tpu.dimension_semantics<arbitrary>], iteration_bounds = array<i64: 1, 1, 1>, scalar_prefetch = 0 : i64, scratch_operands = 1 : i64, tpu.core_type = #tpu.core_type<tc>, window_params = [{transform_indices = @transform_0, window_bounds = array<i64: 8, 128>}, {transform_indices = @transform_1, window_bounds = array<i64: 128, 128>}, {transform_indices = @transform_2, window_bounds = array<i64: 1, 128>}, {transform_indices = @transform_3, window_bounds = array<i64: 8, 128>}]} {
    %c0_i32 = arith.constant 0 : i32
    %0 = arith.cmpi eq, %arg2, %c0_i32 : i32
    %1 = arith.extui %0 : i1 to i32
    %c0_i32_0 = arith.constant 0 : i32
    %2 = arith.cmpi ne, %1, %c0_i32_0 : i32
    scf.if %2 {
      %cst_10 = arith.constant 0.000000e+00 : f32
      %12 = vector.broadcast %cst_10 : f32 to vector<8x128xf32>
      %c0_11 = arith.constant 0 : index
      %c0_12 = arith.constant 0 : index
      %13 = vector.load %arg7[%c0_11, %c0_12] : memref<8x128xf32, #tpu.memory_space<vmem>>, vector<8x128xf32>
      tpu.vector_store %arg7[%c0_11, %c0_12], %12 {strides = array<i32>} : memref<8x128xf32, #tpu.memory_space<vmem>>, vector<8x128xf32>,
    } else {
    }
    %c0 = arith.constant 0 : index
    %c0_1 = arith.constant 0 : index
    %3 = vector.load %arg7[%c0, %c0_1] : memref<8x128xf32, #tpu.memory_space<vmem>>, vector<8x128xf32>
    %c0_2 = arith.constant 0 : index
    %c0_3 = arith.constant 0 : index
    %4 = vector.load %arg3[%c0_2, %c0_3] : memref<8x128xf32, #tpu.memory_space<vmem>>, vector<8x128xf32>
    %c0_4 = arith.constant 0 : index
    %c0_5 = arith.constant 0 : index
    %5 = vector.load %arg4[%c0_4, %c0_5] : memref<128x128xf32, #tpu.memory_space<vmem>>, vector<128x128xf32>
    %cst = arith.constant dense<0.000000e+00> : vector<8x128xf32>
    %6 = tpu.matmul %4, %5, %cst {dimension_numbers = #tpu.dot_dimension_numbers<[1], [0], [0], [1], [0, 0, 1, 1], [], []>} : vector<8x128xf32>, vector<128x128xf32>, vector<8x128xf32> -> vector<8x128xf32>
    %7 = arith.addf %3, %6 : vector<8x128xf32>
    %c0_6 = arith.constant 0 : index
    %c0_7 = arith.constant 0 : index
    %8 = vector.load %arg7[%c0_6, %c0_7] : memref<8x128xf32, #tpu.memory_space<vmem>>, vector<8x128xf32>
    tpu.vector_store %arg7[%c0_6, %c0_7], %7 {strides = array<i32>} : memref<8x128xf32, #tpu.memory_space<vmem>>, vector<8x128xf32>,
    %c0_i32_8 = arith.constant 0 : i32
    %9 = arith.cmpi eq, %arg2, %c0_i32_8 : i32
    %10 = arith.extui %9 : i1 to i32
    %c0_i32_9 = arith.constant 0 : i32
    %11 = arith.cmpi ne, %10, %c0_i32_9 : i32
    scf.if %11 {
      %c0_10 = arith.constant 0 : index
      %c0_11 = arith.constant 0 : index
      %12 = vector.load %arg7[%c0_10, %c0_11] : memref<8x128xf32, #tpu.memory_space<vmem>>, vector<8x128xf32>
      %c0_12 = arith.constant 0 : index
      %c0_13 = arith.constant 0 : index
      %13 = vector.load %arg5[%c0_12, %c0_13] : memref<1x128xf32, #tpu.memory_space<vmem>>, vector<1x128xf32>
      %14 = vector.broadcast %13 : vector<1x128xf32> to vector<8x128xf32>
      %15 = arith.addf %12, %14 : vector<8x128xf32>
      %c0_14 = arith.constant 0 : index
      %c0_15 = arith.constant 0 : index
      %16 = vector.load %arg6[%c0_14, %c0_15] : memref<8x128xf32, #tpu.memory_space<vmem>>, vector<8x128xf32>
      tpu.vector_store %arg6[%c0_14, %c0_15], %15 {strides = array<i32>} : memref<8x128xf32, #tpu.memory_space<vmem>>, vector<8x128xf32>,
    } else {
    }
    return
  }
  func.func @transform_0(%arg0: i32, %arg1: i32, %arg2: i32) -> (i32, i32) {
    %c0_i32 = arith.constant 0 : i32
    return %arg0, %arg2 : i32, i32
  }
  func.func @transform_1(%arg0: i32, %arg1: i32, %arg2: i32) -> (i32, i32) {
    %c0_i32 = arith.constant 0 : i32
    return %arg2, %arg1 : i32, i32
  }
  func.func @transform_2(%arg0: i32, %arg1: i32, %arg2: i32) -> (i32, i32) {
    %c0_i32 = arith.constant 0 : i32
    %c0_i32_0 = arith.constant 0 : i32
    return %c0_i32, %arg1 : i32, i32
  }
  func.func @transform_3(%arg0: i32, %arg1: i32, %arg2: i32) -> (i32, i32) {
    %c0_i32 = arith.constant 0 : i32
    return %arg0, %arg1 : i32, i32
  }
}

</mosaic_0001>

<llo_original>
// kernel: my_linear.1
$region0: #{my_linear.1}
  #allocation0 [shape = 'u32[]', space=smem, size = 0x4, offset = 0x4, fixed_abs, tag = 'smem constant byte address 0x4 - core index']
  #allocation1 [shape = 'u32[72,128]{1,0:T(1,128)}', space=vmem, size = 0x9000, scoped, tag = 'internal scratch']
  #allocation2 [shape = 'f32[8,128]{1,0:T(8,128)}', space=vmem, size = 0x1000, scoped, tag = 'scratch operand']
  %s0 = inlined_call_operand.vmem [shape: f32[8,128], index: 0, kind: input, shape index: {}]
  %s1 = inlined_call_operand.vmem [shape: f32[128,128], index: 1, kind: input, shape index: {}]
  %s2 = inlined_call_operand.vmem [shape: f32[1,128], index: 2, kind: input, shape index: {}]
  %s3 = inlined_call_operand.vmem [shape: f32[8,128], index: 3, kind: output, shape index: {}]
  %s4 = sld [smem:[#allocation0]]
  $region30: #{my_linear.1} parent=0
    _
  %s6 = ssub.s32 1, %s4
  %s7 = scalar_select 0, %s6, %s4
  // Predicated region
  $region2: #{my_linear.1} parent=0 // pred_check
    _
  $region3: #{my_linear.1} parent=0 // pred_check_branch
    %9 = sbr.rel (0) target = $region5
  $region4: #{my_linear.1} parent=0 // pred_region
    _
  $region5: #{my_linear.1} parent=0 // pred_fallthru
    _
  // Predicated region
  $region6: #{my_linear.1} parent=0 // pred_check
    _
  $region7: #{my_linear.1} parent=0 // pred_check_branch
    %11 = sbr.rel (0) target = $region9
  $region8: #{my_linear.1} parent=0 // pred_region
    _
  $region9: #{my_linear.1} parent=0 // pred_fallthru
    _
  // Predicated region
  $region10: #{my_linear.1} parent=0 // pred_check
    _
  $region11: #{my_linear.1} parent=0 // pred_check_branch
    %13 = sbr.rel (0) target = $region13
  $region12: #{my_linear.1} parent=0 // pred_region
    _
  $region13: #{my_linear.1} parent=0 // pred_fallthru
    _
  %p14 = scmp.eq.s32.totalorder 0, 0
  // Predicated region
  $region14: #{my_linear.1} parent=0 // pred_check
    %p15 = pneg %p14
  $region15: #{my_linear.1} parent=0 // pred_check_branch
    %17 = sbr.rel (%p15) target = $region17
  $region16: #{my_linear.1} parent=0 // pred_region
    %18 = vst [vmem:[#allocation2] sm:$0xff] 0.0
  $region17: #{my_linear.1} parent=0 // pred_fallthru
    _
  %v19 = vld [vmem:[#allocation2] sm:$0xff]
  %v20 = vld [vmem:[%s0] sm:$0xff]
  %v21 = vld [vmem:[%s1] sm:$0xff]
  %v22 = vld [vmem:[%s1 + $0x8] sm:$0xff]
  %v23 = vld [vmem:[%s1 + $0x10] sm:$0xff]
  %v24 = vld [vmem:[%s1 + $0x18] sm:$0xff]
  %v25 = vld [vmem:[%s1 + $0x20] sm:$0xff]
  %v26 = vld [vmem:[%s1 + $0x28] sm:$0xff]
  %v27 = vld [vmem:[%s1 + $0x30] sm:$0xff]
  %v28 = vld [vmem:[%s1 + $0x38] sm:$0xff]
  %v29 = vld [vmem:[%s1 + $0x40] sm:$0xff]
  %v30 = vld [vmem:[%s1 + $0x48] sm:$0xff]
  %v31 = vld [vmem:[%s1 + $0x50] sm:$0xff]
  %v32 = vld [vmem:[%s1 + $0x58] sm:$0xff]
  %v33 = vld [vmem:[%s1 + $0x60] sm:$0xff]
  %v34 = vld [vmem:[%s1 + $0x68] sm:$0xff]
  %v35 = vld [vmem:[%s1 + $0x70] sm:$0xff]
  %v36 = vld [vmem:[%s1 + $0x78] sm:$0xff]
  %37 = vmatpush.msra.mxu0 %v36
  %38 = vmatpush.msra.mxu0 %v35
  %39 = vmatpush.msra.mxu0 %v34
  %40 = vmatpush.msra.mxu0 %v33
  %41 = vmatpush.msra.mxu0 %v32
  %42 = vmatpush.msra.mxu0 %v31
  %43 = vmatpush.msra.mxu0 %v30
  %44 = vmatpush.msra.mxu0 %v29
  %45 = vmatpush.msra.mxu0 %v28
  %46 = vmatpush.msra.mxu0 %v27
  %47 = vmatpush.msra.mxu0 %v26
  %48 = vmatpush.msra.mxu0 %v25
  %49 = vmatpush.msra.mxu0 %v24
  %50 = vmatpush.msra.mxu0 %v23
  %51 = vmatpush.msra.mxu0 %v22
  %52 = vmatpush.msra.mxu0 %v21
  %53 = vmatmul.f32.gmra.mxu0 %v20
  %v54 = vpop.f32.mrf.mxu0
  %v55 = vadd.f32 0.0, %v54
  %56 = vdwg.mxu0
  %v57 = vadd.f32 %v19, %v55
  %58 = vst [vmem:[#allocation2] sm:$0xff] %v57
  // Predicated region
  $region18: #{my_linear.1} parent=0 // pred_check
    %p59 = pneg %p14
  $region19: #{my_linear.1} parent=0 // pred_check_branch
    %61 = sbr.rel (%p59) target = $region21
  $region20: #{my_linear.1} parent=0 // pred_region
    %v62 = vld [vmem:[#allocation2] sm:$0xff]
    %v63 = vld [vmem:[%s2] sm:$0x1]
    %v65 = vperm.slane %v63, 0
    %v67 = vadd.f32 %v62, %v65
    %68 = vst [vmem:[%s3] sm:$0xff] %v67
  $region21: #{my_linear.1} parent=0 // pred_fallthru
    _
  // Predicated region
  $region22: #{my_linear.1} parent=0 // pred_check
    _
  $region23: #{my_linear.1} parent=0 // pred_check_branch
    %70 = sbr.rel (0) target = $region25
  $region24: #{my_linear.1} parent=0 // pred_region
    _
  $region25: #{my_linear.1} parent=0 // pred_fallthru
    _
  // Predicated region
  $region26: #{my_linear.1} parent=0 // pred_check
    _
  $region27: #{my_linear.1} parent=0 // pred_check_branch
    %72 = sbr.rel (0) target = $region29
  $region28: #{my_linear.1} parent=0 // pred_region
    _
  $region29: #{my_linear.1} parent=0 // pred_fallthru
    _

</llo_original>
